<compile_context>
chip_gen: v6e
topology: v6e:2x2x1
jax: 0.10.0
libtpu: 0.0.40
codegen_flags: <defaults>
</compile_context>

<pallas_src>
import functools

import jax
import jax.numpy as jnp
from jax import lax
from jax.experimental import pallas as pl
from jax.experimental.pallas import tpu as pltpu


def _round_up(x, m):
    return ((x + m - 1) // m) * m


# ----------------------------- Pallas kernel -------------------------------


def _make_chunked_matmul_kernel(m_tile, w_out, n_chunks):
    """Kernel body: one (b, t_out) output plane per grid step.

    g_ref : (R, Kc) bf16 with R = (H_out + JH - 1) * W_out. Chunk jh reads the
            row window [jh*W_out, jh*W_out + m_tile)  (h-overlap lives in VMEM).
    w_ref : (JH, Kc, Np) bf16 chunked projection weight (constant index map ->
            resident in VMEM, fetched once).
    b_ref : (1, Np) f32 bias.
    o_ref : (m_tile, Np) output block, written once (fused epilogue).
    """

    def kernel(g_ref, w_ref, b_ref, o_ref):
        acc = jnp.dot(g_ref[0:m_tile, :], w_ref[0],
                      preferred_element_type=jnp.float32)
        for jh in range(1, n_chunks):
            r0 = jh * w_out
            acc = acc + jnp.dot(g_ref[r0:r0 + m_tile, :], w_ref[jh],
                                preferred_element_type=jnp.float32)
        o_ref[...] = (acc + b_ref[...]).astype(o_ref.dtype)

    return kernel


def _fused_conv_matmul(g, w_mat, b_mat, *, w_out, m_tile, out_dtype):
    """g: (NBT, R, Kc) bf16, w_mat: (JH, Kc, Np) bf16, b_mat: (1, Np) f32
       -> (NBT, m_tile, Np) out_dtype."""
    nbt, r, kc = g.shape
    n_chunks, kc_w, n_pad = w_mat.shape
    assert kc == kc_w, (kc, kc_w)
    assert r == (n_chunks - 1) * w_out + m_tile, (r, n_chunks, w_out, m_tile)

    kernel = _make_chunked_matmul_kernel(m_tile, w_out, n_chunks)

    out_bytes = jnp.dtype(out_dtype).itemsize
    g_blk = r * kc * 2
    o_blk = m_tile * n_pad * out_bytes
    w_bytes = n_chunks * kc * n_pad * 2
    # double-buffered g & out blocks + resident weight/bias + f32 accumulator.
    vmem_est = 2 * g_blk + 2 * o_blk + w_bytes + m_tile * n_pad * 4 + n_pad * 4
    vmem_limit = int(min(64 * 2**20, max(32 * 2**20, vmem_est + (2 << 20))))

    return pl.pallas_call(
        kernel,
        out_shape=jax.ShapeDtypeStruct((nbt, m_tile, n_pad), out_dtype),
        grid=(nbt,),
        in_specs=[
            pl.BlockSpec((None, r, kc), lambda i: (i, 0, 0)),
            # Constant index maps -> weight / bias stay resident across steps.
            pl.BlockSpec((n_chunks, kc, n_pad), lambda i: (0, 0, 0)),
            pl.BlockSpec((1, n_pad), lambda i: (0, 0)),
        ],
        out_specs=pl.BlockSpec((None, m_tile, n_pad), lambda i: (i, 0, 0)),
        compiler_params=pltpu.CompilerParams(
            dimension_semantics=("parallel",),
            vmem_limit_bytes=vmem_limit),
        cost_estimate=pl.CostEstimate(
            flops=2 * nbt * m_tile * n_chunks * kc * n_pad,
            transcendentals=0,
            bytes_accessed=nbt * (g_blk + o_blk) + w_bytes + n_pad * 4),
    )(g, w_mat, b_mat)


# ------------------------------ forward glue --------------------------------


def _gather_tw_windows(x, kernel, stride, padding):
    """Build the (t, w)-window gathered, channels-last, bf16 input slab.

    Returns g of shape (B*T_out, (H_out+JH-1)*W_out, Kc) with feature order
    (dt, jw, rh, rw, c), Kc = kT * JW * sH * sW * C, plus output spatial dims.
    The h window is NOT gathered here -- it is resolved inside the Pallas
    kernel from VMEM (no HBM duplication along h).
    """
    B, C, T, H, W = x.shape
    kT, kH, kW = kernel
    sT, sH, sW = stride
    pT, pH, pW = padding
    t_out = (T + 2 * pT - kT) // sT + 1
    h_out = (H + 2 * pH - kH) // sH + 1
    w_out = (W + 2 * pW - kW) // sW + 1
    jh_n, jw_n = kH // sH, kW // sW
    hb, wb = h_out + jh_n - 1, w_out + jw_n - 1
    t_span = (t_out - 1) * sT + kT

    xb = x.astype(jnp.bfloat16)                 # cast before any duplication
    xp = jnp.pad(xb, ((0, 0), (0, 0), (pT, pT), (pH, pH), (pW, pW)))
    xp = xp[:, :, :t_span, :hb * sH, :wb * sW]  # crop unused padded tail
    xt = jnp.transpose(xp, (0, 2, 3, 4, 1))     # (B, Tsp, Hsp, Wsp, C)
    xr = xt.reshape(B, t_span, hb, sH, wb, sW, C)

    pieces = []
    for dt in range(kT):
        xd = lax.slice_in_dim(xr, dt, dt + (t_out - 1) * sT + 1, stride=sT,
                              axis=1)           # (B, T_out, hb, sH, wb, sW, C)
        for jw in range(jw_n):
            p = xd[:, :, :, :, jw:jw + w_out, :, :]
            p = jnp.transpose(p, (0, 1, 2, 4, 3, 5, 6))  # (.., hb, w_out, rh, rw, c)
            pieces.append(p.reshape(B, t_out, hb, w_out, sH * sW * C))
    g = pieces[0] if len(pieces) == 1 else jnp.concatenate(pieces, axis=-1)
    kc = kT * jw_n * sH * sW * C
    return g.reshape(B * t_out, hb * w_out, kc), (t_out, h_out, w_out)


@functools.partial(
    jax.jit,
    static_argnames=("kernel", "stride", "padding", "dim_out", "out_dtype"))
def _patch_embed_forward(x, w_mat, b_mat, *, kernel, stride, padding, dim_out,
                         out_dtype):
    """x: (B, C, T, H, W) f32 -> (B, T_out*H_out*W_out, dim_out)."""
    B = x.shape[0]
    g, (t_out, h_out, w_out) = _gather_tw_windows(x, kernel, stride, padding)
    out = _fused_conv_matmul(g, w_mat, b_mat, w_out=w_out,
                             m_tile=h_out * w_out, out_dtype=out_dtype)
    n_pad = out.shape[-1]
    # Rows are ordered (b, t, h, w) row-major == torch flatten(2).transpose(1,2).
    out = out.reshape(B, t_out * h_out * w_out, n_pad)
    if n_pad != dim_out:
        # Only hit when dim_out is not a multiple of 128 (e.g. the test's 32);
        # for typical embed dims (768, 1024, ...) this slice is a no-op.
        out = out[:, :, :dim_out]
    return out


class PatchEmbed:
    """JAX/Pallas equivalent of the PyTorch PatchEmbed module."""

    def __init__(self, dim_in=3, dim_out=768, kernel=(1, 16, 16),
                 stride=(1, 4, 4), padding=(1, 7, 7), conv_2d=False, key=None,
                 out_dtype=jnp.float32):
        self.conv_2d = conv_2d
        if conv_2d:
            kernel = (1,) + tuple(kernel)
            stride = (1,) + tuple(stride)
            padding = (0,) + tuple(padding)
        self.dim_in = dim_in
        self.dim_out = dim_out
        self.kernel = tuple(kernel)
        self.stride = tuple(stride)
        self.padding = tuple(padding)
        self.out_dtype = out_dtype

        kT, kH, kW = self.kernel
        sT, sH, sW = self.stride
        # TODO(synk): support strides that do not divide the kernel size
        # (would need ragged chunking in-kernel or a full-im2col fallback).
        assert kH % sH == 0 and kW % sW == 0, (
            "fused PatchEmbed kernel requires stride to divide kernel size")

        if key is None:
            key = jax.random.PRNGKey(0)
        kw_key, kb_key = jax.random.split(key)
        # torch Conv3d weight layout: (dim_out, dim_in, kT, kH, kW)
        self.weight = 0.02 * jax.random.normal(
            kw_key, (dim_out, dim_in, kT, kH, kW), dtype=jnp.float32)
        self.bias = 0.01 * jax.random.normal(kb_key, (dim_out,),
                                             dtype=jnp.float32)

        # Pre-arrange weight/bias into the chunked kernel layout (paid once):
        #   w_mat[jh, (dt, jw, rh, rw, c), n],  dh = jh*sH + rh, dw = jw*sW + rw,
        #   n padded up to a lane-dense multiple of 128.
        jh_n, jw_n = kH // sH, kW // sW
        n_pad = _round_up(dim_out, 128)
        w6 = self.weight.reshape(dim_out, dim_in, kT, jh_n, sH, jw_n, sW)
        w6 = jnp.transpose(w6, (3, 2, 5, 4, 6, 1, 0))  # (jh, dt, jw, rh, rw, c, n)
        w_mat = w6.reshape(jh_n, kT * jw_n * sH * sW * dim_in, dim_out)
        w_mat = jnp.pad(w_mat, ((0, 0), (0, 0), (0, n_pad - dim_out)))
        self.w_mat = w_mat.astype(jnp.bfloat16)
        self.b_mat = jnp.pad(self.bias, (0, n_pad - dim_out)).reshape(1, n_pad)
        self.n_pad = n_pad

    def __call__(self, x):
        if self.conv_2d:
            x = x[:, :, None, :, :]
        return _patch_embed_forward(
            x, self.w_mat, self.b_mat,
            kernel=self.kernel, stride=self.stride, padding=self.padding,
            dim_out=self.dim_out, out_dtype=self.out_dtype)


# ------------------------------ main / check --------------------------------

if __name__ == "__main__":
    key = jax.random.PRNGKey(0)
    k_x, k_p = jax.random.split(key)

    # Small shapes consistent with the module: B=2, C=3, T=4, H=W=16, dim_out=32.
    B, C, T, H, W = 2, 3, 4, 16, 16
    dim_out = 32
    x = jax.random.normal(k_x, (B, C, T, H, W), dtype=jnp.float32)

    pe = PatchEmbed(dim_in=C, dim_out=dim_out, kernel=(1, 16, 16),
                    stride=(1, 4, 4), padding=(1, 7, 7), key=k_p)

    y = jax.block_until_ready(pe(x))

    # Reference: plain XLA fp32 conv (cross-correlation, same as torch Conv3d),
    # then flatten(2).transpose(1, 2).
    ref = lax.conv_general_dilated(
        x, pe.weight, window_strides=pe.stride,
        padding=[(p, p) for p in pe.padding],
        dimension_numbers=("NCDHW", "OIDHW", "NCDHW"),
    ) + pe.bias[None, :, None, None, None]
    ref = ref.reshape(B, dim_out, -1).transpose(0, 2, 1)

    assert y.shape == ref.shape, (y.shape, ref.shape)
    # bf16 MXU inputs with fp32 accumulation -> loosened tolerance vs fp32 ref.
    max_err = float(jnp.max(jnp.abs(y - ref)))
    assert jnp.allclose(y, ref, atol=3e-2, rtol=3e-2), max_err

    print("KERNEL_OK")
</pallas_src>

<mosaic_0001>
module attributes {stable_mosaic.version = 11 : i64} {
  func.func @kernel(%arg0: i32, %arg1: memref<1x28x192xbf16, #tpu.memory_space<vmem>>, %arg2: memref<4x192x128xbf16, #tpu.memory_space<vmem>>, %arg3: memref<1x128xf32, #tpu.memory_space<vmem>>, %arg4: memref<1x16x128xf32, #tpu.memory_space<vmem>>) attributes {dimension_semantics = [#tpu.dimension_semantics<parallel>], iteration_bounds = array<i64: 12>, scalar_prefetch = 0 : i64, scratch_operands = 0 : i64, tpu.core_type = #tpu.core_type<tc>, window_params = [{transform_indices = @transform_0, window_bounds = array<i64: 1, 28, 192>}, {pipeline_mode = #tpu.pipeline_mode<synchronous>, transform_indices = @transform_1, window_bounds = array<i64: 4, 192, 128>}, {pipeline_mode = #tpu.pipeline_mode<synchronous>, transform_indices = @transform_2, window_bounds = array<i64: 1, 128>}, {transform_indices = @transform_3, window_bounds = array<i64: 1, 16, 128>}]} {
    %c0 = arith.constant 0 : index
    %c0_0 = arith.constant 0 : index
    %c0_1 = arith.constant 0 : index
    %0 = vector.load %arg1[%c0, %c0_0, %c0_1] : memref<1x28x192xbf16, #tpu.memory_space<vmem>>, vector<1x16x192xbf16>
    %1 = vector.shape_cast %0 : vector<1x16x192xbf16> to vector<16x192xbf16>
    %c0_2 = arith.constant 0 : index
    %c0_3 = arith.constant 0 : index
    %c0_4 = arith.constant 0 : index
    %2 = vector.load %arg2[%c0_2, %c0_3, %c0_4] : memref<4x192x128xbf16, #tpu.memory_space<vmem>>, vector<1x192x128xbf16>
    %3 = vector.shape_cast %2 : vector<1x192x128xbf16> to vector<192x128xbf16>
    %cst = arith.constant dense<0.000000e+00> : vector<16x128xf32>
    %4 = tpu.matmul %1, %3, %cst {dimension_numbers = #tpu.dot_dimension_numbers<[1], [0], [0], [1], [0, 0, 1, 1], [], []>} : vector<16x192xbf16>, vector<192x128xbf16>, vector<16x128xf32> -> vector<16x128xf32>
    %c0_5 = arith.constant 0 : index
    %c4 = arith.constant 4 : index
    %c0_6 = arith.constant 0 : index
    %5 = vector.load %arg1[%c0_5, %c4, %c0_6] : memref<1x28x192xbf16, #tpu.memory_space<vmem>>, vector<1x16x192xbf16>
    %6 = vector.shape_cast %5 : vector<1x16x192xbf16> to vector<16x192xbf16>
    %c1 = arith.constant 1 : index
    %c0_7 = arith.constant 0 : index
    %c0_8 = arith.constant 0 : index
    %7 = vector.load %arg2[%c1, %c0_7, %c0_8] : memref<4x192x128xbf16, #tpu.memory_space<vmem>>, vector<1x192x128xbf16>
    %8 = vector.shape_cast %7 : vector<1x192x128xbf16> to vector<192x128xbf16>
    %cst_9 = arith.constant dense<0.000000e+00> : vector<16x128xf32>
    %9 = tpu.matmul %6, %8, %cst_9 {dimension_numbers = #tpu.dot_dimension_numbers<[1], [0], [0], [1], [0, 0, 1, 1], [], []>} : vector<16x192xbf16>, vector<192x128xbf16>, vector<16x128xf32> -> vector<16x128xf32>
    %10 = arith.addf %4, %9 : vector<16x128xf32>
    %c0_10 = arith.constant 0 : index
    %c8 = arith.constant 8 : index
    %c0_11 = arith.constant 0 : index
    %11 = vector.load %arg1[%c0_10, %c8, %c0_11] : memref<1x28x192xbf16, #tpu.memory_space<vmem>>, vector<1x16x192xbf16>
    %12 = vector.shape_cast %11 : vector<1x16x192xbf16> to vector<16x192xbf16>
    %c2 = arith.constant 2 : index
    %c0_12 = arith.constant 0 : index
    %c0_13 = arith.constant 0 : index
    %13 = vector.load %arg2[%c2, %c0_12, %c0_13] : memref<4x192x128xbf16, #tpu.memory_space<vmem>>, vector<1x192x128xbf16>
    %14 = vector.shape_cast %13 : vector<1x192x128xbf16> to vector<192x128xbf16>
    %cst_14 = arith.constant dense<0.000000e+00> : vector<16x128xf32>
    %15 = tpu.matmul %12, %14, %cst_14 {dimension_numbers = #tpu.dot_dimension_numbers<[1], [0], [0], [1], [0, 0, 1, 1], [], []>} : vector<16x192xbf16>, vector<192x128xbf16>, vector<16x128xf32> -> vector<16x128xf32>
    %16 = arith.addf %10, %15 : vector<16x128xf32>
    %c0_15 = arith.constant 0 : index
    %c12 = arith.constant 12 : index
    %c0_16 = arith.constant 0 : index
    %17 = vector.load %arg1[%c0_15, %c12, %c0_16] : memref<1x28x192xbf16, #tpu.memory_space<vmem>>, vector<1x16x192xbf16>
    %18 = vector.shape_cast %17 : vector<1x16x192xbf16> to vector<16x192xbf16>
    %c3 = arith.constant 3 : index
    %c0_17 = arith.constant 0 : index
    %c0_18 = arith.constant 0 : index
    %19 = vector.load %arg2[%c3, %c0_17, %c0_18] : memref<4x192x128xbf16, #tpu.memory_space<vmem>>, vector<1x192x128xbf16>
    %20 = vector.shape_cast %19 : vector<1x192x128xbf16> to vector<192x128xbf16>
    %cst_19 = arith.constant dense<0.000000e+00> : vector<16x128xf32>
    %21 = tpu.matmul %18, %20, %cst_19 {dimension_numbers = #tpu.dot_dimension_numbers<[1], [0], [0], [1], [0, 0, 1, 1], [], []>} : vector<16x192xbf16>, vector<192x128xbf16>, vector<16x128xf32> -> vector<16x128xf32>
    %22 = arith.addf %16, %21 : vector<16x128xf32>
    %c0_20 = arith.constant 0 : index
    %c0_21 = arith.constant 0 : index
    %23 = vector.load %arg3[%c0_20, %c0_21] : memref<1x128xf32, #tpu.memory_space<vmem>>, vector<1x128xf32>
    %24 = vector.broadcast %23 : vector<1x128xf32> to vector<16x128xf32>
    %25 = arith.addf %22, %24 : vector<16x128xf32>
    %c0_22 = arith.constant 0 : index
    %c0_23 = arith.constant 0 : index
    %c0_24 = arith.constant 0 : index
    %26 = vector.load %arg4[%c0_22, %c0_23, %c0_24] : memref<1x16x128xf32, #tpu.memory_space<vmem>>, vector<1x16x128xf32>
    %27 = vector.shape_cast %26 : vector<1x16x128xf32> to vector<16x128xf32>
    %28 = vector.shape_cast %25 : vector<16x128xf32> to vector<1x16x128xf32>
    tpu.vector_store %arg4[%c0_22, %c0_23, %c0_24], %28 {strides = array<i32>} : memref<1x16x128xf32, #tpu.memory_space<vmem>>, vector<1x16x128xf32>,
    return
  }
  func.func @transform_0(%arg0: i32) -> (i32, i32, i32) {
    %c0_i32 = arith.constant 0 : i32
    %c0_i32_0 = arith.constant 0 : i32
    %c0_i32_1 = arith.constant 0 : i32
    return %arg0, %c0_i32, %c0_i32_0 : i32, i32, i32
  }
  func.func @transform_1(%arg0: i32) -> (i32, i32, i32) {
    %c0_i32 = arith.constant 0 : i32
    %c0_i32_0 = arith.constant 0 : i32
    %c0_i32_1 = arith.constant 0 : i32
    %c0_i32_2 = arith.constant 0 : i32
    return %c0_i32, %c0_i32_0, %c0_i32_1 : i32, i32, i32
  }
  func.func @transform_2(%arg0: i32) -> (i32, i32) {
    %c0_i32 = arith.constant 0 : i32
    %c0_i32_0 = arith.constant 0 : i32
    %c0_i32_1 = arith.constant 0 : i32
    return %c0_i32, %c0_i32_0 : i32, i32
  }
  func.func @transform_3(%arg0: i32) -> (i32, i32, i32) {
    %c0_i32 = arith.constant 0 : i32
    %c0_i32_0 = arith.constant 0 : i32
    %c0_i32_1 = arith.constant 0 : i32
    return %arg0, %c0_i32, %c0_i32_0 : i32, i32, i32
  }
}

</mosaic_0001>

<llo_original>
// kernel: _patch_embed_forward.1
$region0: #{_patch_embed_forward.1}
  #allocation0 [shape = 'u32[]', space=smem, size = 0x4, offset = 0x4, fixed_abs, tag = 'smem constant byte address 0x4 - core index']
  #allocation1 [shape = 'u32[144,128]{1,0:T(1,128)}', space=vmem, size = 0x12000, scoped, tag = 'internal scratch']
  %s0 = inlined_call_operand.vmem [shape: bf16[12,28,192], index: 0, kind: input, shape index: {}]
  %s1 = inlined_call_operand.vmem [shape: bf16[4,192,128], index: 1, kind: input, shape index: {}]
  %s2 = inlined_call_operand.vmem [shape: f32[1,128], index: 2, kind: input, shape index: {}]
  %s3 = inlined_call_operand.vmem [shape: f32[12,16,128], index: 3, kind: output, shape index: {}]
  %s4 = sld [smem:[#allocation0]]
  $region45: #{_patch_embed_forward.1} parent=0
    _
  %s6 = ssub.s32 1, %s4
  %s7 = scalar_select 0, %s6, %s4
  loop: start=0, step=1, limit=14
  $region2: #{_patch_embed_forward.1} parent=0 // loop_pre_header
    _
  $region3: #{_patch_embed_forward.1} parent=0 // loop_header
    %s9 = sphi 0, %s13
    %p10 = scmp.ge.s32.totalorder %s9, 14
    %s19 = sphi 0, %s21
    %s22 = sphi 0, %s19
    %s23 = sphi 0, %s22
    %s39 = sphi 0, %s23
    %s43 = sphi 0, %s43
    %s45 = sphi 0, %s43
    %s46 = sphi 0, %s45
    %s60 = sphi 0, %s46
    %s64 = sphi 0, %s64
    %s66 = sphi 0, %s64
    %s67 = sphi 0, %s66
    %s81 = sphi 0, %s67
    %s87 = sphi 0, %s89
    %s90 = sphi 0, %s87
    %s91 = sphi 0, %s90
    %s107 = sphi 0, %s91
  $region4: #{_patch_embed_forward.1} parent=0 // loop_header_branch
    %12 = sbr.rel (%p10) target = $region8
  $region5: #{_patch_embed_forward.1} parent=0 // loop_body
    %s14 = ssub.s32 %s9, 1
    %s15 = ssub.s32 %s9, 2
    %s16 = sadd.s32 %s9, 1
    %s17 = ssub.s32 %s9, %s16
    %p18 = scmp.eq.s32.totalorder %s17, 0
    %s20 = sadd.s32 %s19, 1
    %s21 = scalar_select %p18, %s19, %s20
    %p24 = pneg %p18
    %p25 = scmp.eq.s32.totalorder %s9, 11
    %p26 = por %p24, %p25
    %p27 = scmp.ne.s32.totalorder %s19, %s22
    %p28 = scmp.eq.s32.totalorder %s9, 0
    %p29 = por %p27, %p28
    %p30 = scmp.ne.s32.totalorder %s19, %s22
    %p31 = scmp.eq.s32.totalorder %s14, 11
    %p32 = por %p30, %p31
    %p33 = scmp.ne.s32.totalorder %s22, %s23
    %p34 = scmp.eq.s32.totalorder %s14, 0
    %p35 = por %p33, %p34
    %p36 = scmp.ne.s32.totalorder %s22, %s23
    %p37 = scmp.eq.s32.totalorder %s15, 11
    %p38 = por %p36, %p37
    %p40 = scmp.ne.s32.totalorder %s23, %s39
    %p41 = scmp.eq.s32.totalorder %s15, 0
    %p42 = por %p40, %p41
    %s44 = sadd.s32 %s43, 1
    %p47 = scmp.eq.s32.totalorder %s9, 11
    %p48 = scmp.ne.s32.totalorder %s43, %s45
    %p49 = scmp.eq.s32.totalorder %s9, 0
    %p50 = por %p48, %p49
    %p51 = scmp.ne.s32.totalorder %s43, %s45
    %p52 = scmp.eq.s32.totalorder %s14, 11
    %p53 = por %p51, %p52
    %p54 = scmp.ne.s32.totalorder %s45, %s46
    %p55 = scmp.eq.s32.totalorder %s14, 0
    %p56 = por %p54, %p55
    %p57 = scmp.ne.s32.totalorder %s45, %s46
    %p58 = scmp.eq.s32.totalorder %s15, 11
    %p59 = por %p57, %p58
    %p61 = scmp.ne.s32.totalorder %s46, %s60
    %p62 = scmp.eq.s32.totalorder %s15, 0
    %p63 = por %p61, %p62
    %s65 = sadd.s32 %s64, 1
    %p68 = scmp.eq.s32.totalorder %s9, 11
    %p69 = scmp.ne.s32.totalorder %s64, %s66
    %p70 = scmp.eq.s32.totalorder %s9, 0
    %p71 = por %p69, %p70
    %p72 = scmp.ne.s32.totalorder %s64, %s66
    %p73 = scmp.eq.s32.totalorder %s14, 11
    %p74 = por %p72, %p73
    %p75 = scmp.ne.s32.totalorder %s66, %s67
    %p76 = scmp.eq.s32.totalorder %s14, 0
    %p77 = por %p75, %p76
    %p78 = scmp.ne.s32.totalorder %s66, %s67
    %p79 = scmp.eq.s32.totalorder %s15, 11
    %p80 = por %p78, %p79
    %p82 = scmp.ne.s32.totalorder %s67, %s81
    %p83 = scmp.eq.s32.totalorder %s15, 0
    %p84 = por %p82, %p83
    %s85 = ssub.s32 %s9, %s16
    %p86 = scmp.eq.s32.totalorder %s85, 0
    %s88 = sadd.s32 %s87, 1
    %s89 = scalar_select %p86, %s87, %s88
    %p92 = pneg %p86
    %p93 = scmp.eq.s32.totalorder %s9, 11
    %p94 = por %p92, %p93
    %p95 = scmp.ne.s32.totalorder %s87, %s90
    %p96 = scmp.eq.s32.totalorder %s9, 0
    %p97 = por %p95, %p96
    %p98 = scmp.ne.s32.totalorder %s87, %s90
    %p99 = scmp.eq.s32.totalorder %s14, 11
    %p100 = por %p98, %p99
    %p101 = scmp.ne.s32.totalorder %s90, %s91
    %p102 = scmp.eq.s32.totalorder %s14, 0
    %p103 = por %p101, %p102
    %p104 = scmp.ne.s32.totalorder %s90, %s91
    %p105 = scmp.eq.s32.totalorder %s15, 11
    %p106 = por %p104, %p105
    %p108 = scmp.ne.s32.totalorder %s91, %s107
    %p109 = scmp.eq.s32.totalorder %s15, 0
    %p110 = por %p108, %p109
    %p111 = scmp.le.s32.totalorder 1, %s9
    %p112 = scmp.lt.s32.totalorder %s9, 13
    %p113 = pnand %p111, %p112
    %p114 = pneg %p113
    // Predicated region
    $region9: #{_patch_embed_forward.1} parent=5 // pred_check
      _
    $region10: #{_patch_embed_forward.1} parent=5 // pred_check_branch
      %116 = sbr.rel (%p113) target = $region12
    $region11: #{_patch_embed_forward.1} parent=5 // pred_region
      %s117 = ssub.s32 %s9, 1
      // Predicated region
      $region13: #{_patch_embed_forward.1} parent=11 // pred_check
        %p118 = pneg %p56
      $region14: #{_patch_embed_forward.1} parent=11 // pred_check_branch
        %120 = sbr.rel (%p118) target = $region16
      $region15: #{_patch_embed_forward.1} parent=11 // pred_region
        _
      $region16: #{_patch_embed_forward.1} parent=11 // pred_fallthru
        _
      // Predicated region
      $region17: #{_patch_embed_forward.1} parent=11 // pred_check
        %p121 = pneg %p77
      $region18: #{_patch_embed_forward.1} parent=11 // pred_check_branch
        %123 = sbr.rel (%p121) target = $region20
      $region19: #{_patch_embed_forward.1} parent=11 // pred_region
        _
      $region20: #{_patch_embed_forward.1} parent=11 // pred_fallthru
        _
    $region12: #{_patch_embed_forward.1} parent=5 // pred_fallthru
      _
    %p124 = scmp.lt.s32.totalorder %s9, 12
    // Predicated region
    $region21: #{_patch_embed_forward.1} parent=5 // pred_check
      %p125 = pneg %p124
    $region22: #{_patch_embed_forward.1} parent=5 // pred_check_branch
      %127 = sbr.rel (%p125) target = $region24
    $region23: #{_patch_embed_forward.1} parent=5 // pred_region
      // Predicated region
      $region25: #{_patch_embed_forward.1} parent=23 // pred_check
        %p128 = pneg %p29
      $region26: #{_patch_embed_forward.1} parent=23 // pred_check_branch
        %130 = sbr.rel (%p128) target = $region28
      $region27: #{_patch_embed_forward.1} parent=23 // pred_region
        %p131 = scmp.lt.s32.totalorder %s9, 11
        %s132 = scalar_select %p131, %s9, 11
        %s133 = smul.addr %s132, 8
        %s134 = smul.addr %s133, 4
        %s135 = scalar_lea.vmem %s0, %s134
      $region28: #{_patch_embed_forward.1} parent=23 // pred_fallthru
        _
    $region24: #{_patch_embed_forward.1} parent=5 // pred_fallthru
      _
    %p136 = scmp.le.s32.totalorder 1, %s9
    %p137 = scmp.lt.s32.totalorder %s9, 13
    %p138 = pnand %p136, %p137
    %p139 = pneg %p138
    // Predicated region
    $region29: #{_patch_embed_forward.1} parent=5 // pred_check
      _
    $region30: #{_patch_embed_forward.1} parent=5 // pred_check_branch
      %141 = sbr.rel (%p138) target = $region32
    $region31: #{_patch_embed_forward.1} parent=5 // pred_region
      %s142 = ssub.s32 %s9, 1
      %p143 = scmp.lt.s32.totalorder %s14, 11
      %s144 = scalar_select %p143, %s14, 11
      %s145 = smul.addr %s144, 8
      %s146 = smul.addr %s145, 4
      %s147 = scalar_lea.vmem %s0, %s146
      %p148 = pneg %p35
      %p149 = pneg %p32
      %p150 = pneg %p56
      %p151 = pneg %p53
      %p152 = pneg %p77
      %p153 = pneg %p74
      %p154 = pneg %p103
      %p155 = pneg %p100
      %p156 = scmp.lt.s32.totalorder %s14, 11
      %s157 = scalar_select %p156, %s14, 11
      %s158 = smul.addr %s157, 2
      %s159 = smul.addr %s158, 8
      %s160 = scalar_lea.vmem %s3, %s159
      %p161 = scmp.lt.s32.totalorder %s14, 11
      %s162 = scalar_select %p161, %s14, 11
      %s163 = smul.addr %s162, 8
      %s164 = smul.addr %s163, 4
      %s165 = scalar_lea.vmem %s0, %s164
      %p166 = scmp.lt.s32.totalorder %s14, 11
      %s167 = scalar_select %p166, %s14, 11
      %s168 = smul.addr %s167, 2
      %s169 = smul.addr %s168, 8
      %s170 = scalar_lea.vmem %s3, %s169
      %v172 = vld [vmem:[%s165] sm:$0xff]
      %v173 = vld [vmem:[%s165 + $0x8] sm:$0xff]
      %v174 = vld [vmem:[%s1] sm:$0xf]
      %v175 = vld [vmem:[%s1 + $0x4] sm:$0xf]
      %v176 = vld [vmem:[%s1 + $0x8] sm:$0xf]
      %v177 = vld [vmem:[%s1 + $0xc] sm:$0xf]
      %v178 = vld [vmem:[%s1 + $0x10] sm:$0xf]
      %v179 = vld [vmem:[%s1 + $0x14] sm:$0xf]
      %v180 = vld [vmem:[%s1 + $0x18] sm:$0xf]
      %v181 = vld [vmem:[%s1 + $0x1c] sm:$0xf]
      %v182 = vld [vmem:[%s1 + $0x20] sm:$0xf]
      %v183 = vld [vmem:[%s1 + $0x24] sm:$0xf]
      %v184 = vld [vmem:[%s1 + $0x28] sm:$0xf]
      %v185 = vld [vmem:[%s1 + $0x2c] sm:$0xf]
      %v186 = vld [vmem:[%s1 + $0x30] sm:$0xf]
      %v187 = vld [vmem:[%s1 + $0x34] sm:$0xf]
      %v188 = vld [vmem:[%s1 + $0x38] sm:$0xf]
      %v189 = vld [vmem:[%s1 + $0x3c] sm:$0xf]
      %v190 = vld [vmem:[%s1 + $0x40] sm:$0xf]
      %v191 = vld [vmem:[%s1 + $0x44] sm:$0xf]
      %v192 = vld [vmem:[%s1 + $0x48] sm:$0xf]
      %v193 = vld [vmem:[%s1 + $0x4c] sm:$0xf]
      %v194 = vld [vmem:[%s1 + $0x50] sm:$0xf]
      %v195 = vld [vmem:[%s1 + $0x54] sm:$0xf]
      %v196 = vld [vmem:[%s1 + $0x58] sm:$0xf]
      %v197 = vld [vmem:[%s1 + $0x5c] sm:$0xf]
      %v198 = vld [vmem:[%s165] sm:$0xcc]
      %v199 = vld [vmem:[%s165 + $0x10] sm:$0x33]
      %s200 = scalar_lea.vmem %s1, 96
      %v201 = vld [vmem:[%s200] sm:$0xf]
      %v202 = vld [vmem:[%s200 + $0x4] sm:$0xf]
      %v203 = vld [vmem:[%s200 + $0x8] sm:$0xf]
      %v204 = vld [vmem:[%s200 + $0xc] sm:$0xf]
      %v205 = vld [vmem:[%s200 + $0x10] sm:$0xf]
      %v206 = vld [vmem:[%s200 + $0x14] sm:$0xf]
      %v207 = vld [vmem:[%s200 + $0x18] sm:$0xf]
      %v208 = vld [vmem:[%s200 + $0x1c] sm:$0xf]
      %v209 = vld [vmem:[%s200 + $0x20] sm:$0xf]
      %v210 = vld [vmem:[%s200 + $0x24] sm:$0xf]
      %v211 = vld [vmem:[%s200 + $0x28] sm:$0xf]
      %v212 = vld [vmem:[%s200 + $0x2c] sm:$0xf]
      %v213 = vld [vmem:[%s200 + $0x30] sm:$0xf]
      %v214 = vld [vmem:[%s200 + $0x34] sm:$0xf]
      %v215 = vld [vmem:[%s200 + $0x38] sm:$0xf]
      %v216 = vld [vmem:[%s200 + $0x3c] sm:$0xf]
      %v217 = vld [vmem:[%s200 + $0x40] sm:$0xf]
      %v218 = vld [vmem:[%s200 + $0x44] sm:$0xf]
      %v219 = vld [vmem:[%s200 + $0x48] sm:$0xf]
      %v220 = vld [vmem:[%s200 + $0x4c] sm:$0xf]
      %v221 = vld [vmem:[%s200 + $0x50] sm:$0xf]
      %v222 = vld [vmem:[%s200 + $0x54] sm:$0xf]
      %v223 = vld [vmem:[%s200 + $0x58] sm:$0xf]
      %v224 = vld [vmem:[%s200 + $0x5c] sm:$0xf]
      %v228 = vunpack.c.l.b16 %v198
      %v229 = vunpack.c.h.b16 %v198
      %v230 = vunpack.c.l.b16 %v173
      %v231 = vunpack.c.h.b16 %v173
      %v232 = vunpack.c.l.b16 %v199
      %v233 = vunpack.c.h.b16 %v199
      %v234 = vpack.c.b16 %v230, %v228
      %v235 = vpack.c.b16 %v231, %v229
      %v236 = vpack.c.b16 %v232, %v232
      %v237 = vpack.c.b16 %v233, %v233
      %vm238 = vcmask 1045504
      %v239 = vrot.slane %v234, 2
      %v240 = vrot.slane %v236, 2
      %v241 = vsel %vm238, %v239, %v240
      %v242 = vrot.slane %v235, 2
      %v243 = vrot.slane %v237, 2
      %v244 = vsel %vm238, %v242, %v243
      %v270 = vunpack.c.l.b16 %v201
      %v271 = vunpack.c.l.b16 %v202
      %v272 = vunpack.c.l.b16 %v203
      %v273 = vunpack.c.l.b16 %v204
      %v274 = vunpack.c.l.b16 %v205
      %v275 = vunpack.c.l.b16 %v206
      %v276 = vunpack.c.l.b16 %v207
      %v277 = vunpack.c.l.b16 %v208
      %v278 = vunpack.c.l.b16 %v209
      %v279 = vunpack.c.l.b16 %v210
      %v280 = vunpack.c.l.b16 %v211
      %v281 = vunpack.c.l.b16 %v212
      %v282 = vunpack.c.l.b16 %v213
      %v283 = vunpack.c.l.b16 %v214
      %v284 = vunpack.c.l.b16 %v215
      %v285 = vunpack.c.l.b16 %v216
      %v286 = vunpack.c.l.b16 %v217
      %v287 = vunpack.c.l.b16 %v218
      %v288 = vunpack.c.l.b16 %v219
      %v289 = vunpack.c.l.b16 %v220
      %v290 = vunpack.c.l.b16 %v221
      %v291 = vunpack.c.l.b16 %v222
      %v292 = vunpack.c.l.b16 %v223
      %v293 = vunpack.c.l.b16 %v224
      %v294 = vpack.c.b16 %v271, %v270
      %v295 = vpack.c.b16 %v273, %v272
      %v296 = vpack.c.b16 %v275, %v274
      %v297 = vpack.c.b16 %v277, %v276
      %v298 = vpack.c.b16 %v279, %v278
      %v299 = vpack.c.b16 %v281, %v280
      %v300 = vpack.c.b16 %v283, %v282
      %v301 = vpack.c.b16 %v285, %v284
      %v302 = vpack.c.b16 %v287, %v286
      %v303 = vpack.c.b16 %v289, %v288
      %v304 = vpack.c.b16 %v291, %v290
      %v305 = vpack.c.b16 %v293, %v292
      %vm318 = vcmask 523264
      %v320 = vsel %vm318, %v244, 0
      %322 = vmatprep.subr.bf16.mxu0 0
      %323 = vmatpush1.bf16.msra.mxu0 %v301
      %324 = vmatprep.subr.bf16.mxu0 0
      %325 = vmatpush1.bf16.msra.mxu0 %v300
      %326 = vmatprep.subr.bf16.mxu0 0
      %327 = vmatpush1.bf16.msra.mxu0 %v299
      %328 = vmatprep.subr.bf16.mxu0 0
      %329 = vmatpush1.bf16.msra.mxu0 %v298
      %330 = vmatprep.subr.bf16.mxu0 0
      %331 = vmatpush1.bf16.msra.mxu0 %v297
      %332 = vmatprep.subr.bf16.mxu0 0
      %333 = vmatpush1.bf16.msra.mxu0 %v296
      %334 = vmatprep.subr.bf16.mxu0 0
      %335 = vmatpush1.bf16.msra.mxu0 %v295
      %336 = vmatprep.subr.bf16.mxu0 0
      %337 = vmatpush1.bf16.msra.mxu0 %v294
      %338 = vmatprep.subr.bf16.mxu0 0
      %339 = vmatpush2.bf16.msra.mxu0 0
      %340 = vmatprep.subr.bf16.mxu0 0
      %341 = vmatpush2.bf16.msra.mxu0 0
      %342 = vmatprep.subr.bf16.mxu0 0
      %343 = vmatpush2.bf16.msra.mxu0 0
      %344 = vmatprep.subr.bf16.mxu0 0
      %345 = vmatpush2.bf16.msra.mxu0 0
      %346 = vmatprep.subr.bf16.mxu0 0
      %347 = vmatpush2.bf16.msra.mxu0 %v305
      %348 = vmatprep.subr.bf16.mxu0 0
      %349 = vmatpush2.bf16.msra.mxu0 %v304
      %350 = vmatprep.subr.bf16.mxu0 0
      %351 = vmatpush2.bf16.msra.mxu0 %v303
      %352 = vmatprep.subr.bf16.mxu0 0
      %353 = vmatpush2.bf16.msra.mxu0 %v302
      %354 = vmatprep.mubr.bf16.mxu0 %v320
      %355 = vmatmul.mubr.bf16.gmra.mxu0 %v241
      %v356 = vpop.f32.mrf.mxu0
      %v357 = vadd.f32 0.0, %v356
      %v358 = vpop.f32.mrf.mxu0
      %v359 = vpop.f32.mrf.mxu0
      %v360 = vadd.f32 0.0, %v359
      %v361 = vpop.f32.mrf.mxu0
      %362 = vdwg.mxu0
      %v364 = vunpack.c.l.b16 %v172
      %v365 = vunpack.c.h.b16 %v172
      %v366 = vpack.c.b16 %v230, %v364
      %v367 = vpack.c.b16 %v231, %v365
      %v393 = vunpack.c.l.b16 %v174
      %v394 = vunpack.c.l.b16 %v175
      %v395 = vunpack.c.l.b16 %v176
      %v396 = vunpack.c.l.b16 %v177
      %v397 = vunpack.c.l.b16 %v178
      %v398 = vunpack.c.l.b16 %v179
      %v399 = vunpack.c.l.b16 %v180
      %v400 = vunpack.c.l.b16 %v181
      %v401 = vunpack.c.l.b16 %v182
      %v402 = vunpack.c.l.b16 %v183
      %v403 = vunpack.c.l.b16 %v184
      %v404 = vunpack.c.l.b16 %v185
      %v405 = vunpack.c.l.b16 %v186
      %v406 = vunpack.c.l.b16 %v187
      %v407 = vunpack.c.l.b16 %v188
      %v408 = vunpack.c.l.b16 %v189
      %v409 = vunpack.c.l.b16 %v190
      %v410 = vunpack.c.l.b16 %v191
      %v411 = vunpack.c.l.b16 %v192
      %v412 = vunpack.c.l.b16 %v193
      %v413 = vunpack.c.l.b16 %v194
      %v414 = vunpack.c.l.b16 %v195
      %v415 = vunpack.c.l.b16 %v196
      %v416 = vunpack.c.l.b16 %v197
      %v417 = vpack.c.b16 %v394, %v393
      %v418 = vpack.c.b16 %v396, %v395
      %v419 = vpack.c.b16 %v398, %v397
      %v420 = vpack.c.b16 %v400, %v399
      %v421 = vpack.c.b16 %v402, %v401
      %v422 = vpack.c.b16 %v404, %v403
      %v423 = vpack.c.b16 %v406, %v405
      %v424 = vpack.c.b16 %v408, %v407
      %v425 = vpack.c.b16 %v410, %v409
      %v426 = vpack.c.b16 %v412, %v411
      %v427 = vpack.c.b16 %v414, %v413
      %v428 = vpack.c.b16 %v416, %v415
      %v442 = vsel %vm318, %v367, 0
      %444 = vmatprep.subr.bf16.mxu0 0
      %445 = vmatpush1.bf16.msra.mxu0 %v424
      %446 = vmatprep.subr.bf16.mxu0 0
      %447 = vmatpush1.bf16.msra.mxu0 %v423
      %448 = vmatprep.subr.bf16.mxu0 0
      %449 = vmatpush1.bf16.msra.mxu0 %v422
      %450 = vmatprep.subr.bf16.mxu0 0
      %451 = vmatpush1.bf16.msra.mxu0 %v421
      %452 = vmatprep.subr.bf16.mxu0 0
      %453 = vmatpush1.bf16.msra.mxu0 %v420
      %454 = vmatprep.subr.bf16.mxu0 0
      %455 = vmatpush1.bf16.msra.mxu0 %v419
      %456 = vmatprep.subr.bf16.mxu0 0
      %457 = vmatpush1.bf16.msra.mxu0 %v418
      %458 = vmatprep.subr.bf16.mxu0 0
      %459 = vmatpush1.bf16.msra.mxu0 %v417
      %460 = vmatprep.subr.bf16.mxu0 0
      %461 = vmatpush2.bf16.msra.mxu0 0
      %462 = vmatprep.subr.bf16.mxu0 0
      %463 = vmatpush2.bf16.msra.mxu0 0
      %464 = vmatprep.subr.bf16.mxu0 0
      %465 = vmatpush2.bf16.msra.mxu0 0
      %466 = vmatprep.subr.bf16.mxu0 0
      %467 = vmatpush2.bf16.msra.mxu0 0
      %468 = vmatprep.subr.bf16.mxu0 0
      %469 = vmatpush2.bf16.msra.mxu0 %v428
      %470 = vmatprep.subr.bf16.mxu0 0
      %471 = vmatpush2.bf16.msra.mxu0 %v427
      %472 = vmatprep.subr.bf16.mxu0 0
      %473 = vmatpush2.bf16.msra.mxu0 %v426
      %474 = vmatprep.subr.bf16.mxu0 0
      %475 = vmatpush2.bf16.msra.mxu0 %v425
      %476 = vmatprep.mubr.bf16.mxu0 %v442
      %477 = vmatmul.mubr.bf16.gmra.mxu0 %v366
      %v478 = vpop.f32.mrf.mxu0
      %v479 = vadd.f32 %v357, %v478
      %v480 = vpop.f32.mrf.mxu0
      %v481 = vpop.f32.mrf.mxu0
      %v482 = vadd.f32 %v360, %v481
      %v483 = vpop.f32.mrf.mxu0
      %484 = vdwg.mxu0
      %v485 = vld [vmem:[%s165 + $0x10] sm:$0xff]
      %s486 = scalar_lea.vmem %s1, 192
      %v487 = vld [vmem:[%s486] sm:$0xf]
      %v488 = vld [vmem:[%s486 + $0x4] sm:$0xf]
      %v489 = vld [vmem:[%s486 + $0x8] sm:$0xf]
      %v490 = vld [vmem:[%s486 + $0xc] sm:$0xf]
      %v491 = vld [vmem:[%s486 + $0x10] sm:$0xf]
      %v492 = vld [vmem:[%s486 + $0x14] sm:$0xf]
      %v493 = vld [vmem:[%s486 + $0x18] sm:$0xf]
      %v494 = vld [vmem:[%s486 + $0x1c] sm:$0xf]
      %v495 = vld [vmem:[%s486 + $0x20] sm:$0xf]
      %v496 = vld [vmem:[%s486 + $0x24] sm:$0xf]
      %v497 = vld [vmem:[%s486 + $0x28] sm:$0xf]
      %v498 = vld [vmem:[%s486 + $0x2c] sm:$0xf]
      %v499 = vld [vmem:[%s486 + $0x30] sm:$0xf]
      %v500 = vld [vmem:[%s486 + $0x34] sm:$0xf]
      %v501 = vld [vmem:[%s486 + $0x38] sm:$0xf]
      %v502 = vld [vmem:[%s486 + $0x3c] sm:$0xf]
      %v503 = vld [vmem:[%s486 + $0x40] sm:$0xf]
      %v504 = vld [vmem:[%s486 + $0x44] sm:$0xf]
      %v505 = vld [vmem:[%s486 + $0x48] sm:$0xf]
      %v506 = vld [vmem:[%s486 + $0x4c] sm:$0xf]
      %v507 = vld [vmem:[%s486 + $0x50] sm:$0xf]
      %v508 = vld [vmem:[%s486 + $0x54] sm:$0xf]
      %v509 = vld [vmem:[%s486 + $0x58] sm:$0xf]
      %v510 = vld [vmem:[%s486 + $0x5c] sm:$0xf]
      %v512 = vunpack.c.l.b16 %v485
      %v513 = vunpack.c.h.b16 %v485
      %v514 = vpack.c.b16 %v512, %v230
      %v515 = vpack.c.b16 %v513, %v231
      %v541 = vunpack.c.l.b16 %v487
      %v542 = vunpack.c.l.b16 %v488
      %v543 = vunpack.c.l.b16 %v489
      %v544 = vunpack.c.l.b16 %v490
      %v545 = vunpack.c.l.b16 %v491
      %v546 = vunpack.c.l.b16 %v492
      %v547 = vunpack.c.l.b16 %v493
      %v548 = vunpack.c.l.b16 %v494
      %v549 = vunpack.c.l.b16 %v495
      %v550 = vunpack.c.l.b16 %v496
      %v551 = vunpack.c.l.b16 %v497
      %v552 = vunpack.c.l.b16 %v498
      %v553 = vunpack.c.l.b16 %v499
      %v554 = vunpack.c.l.b16 %v500
      %v555 = vunpack.c.l.b16 %v501
      %v556 = vunpack.c.l.b16 %v502
      %v557 = vunpack.c.l.b16 %v503
      %v558 = vunpack.c.l.b16 %v504
      %v559 = vunpack.c.l.b16 %v505
      %v560 = vunpack.c.l.b16 %v506
      %v561 = vunpack.c.l.b16 %v507
      %v562 = vunpack.c.l.b16 %v508
      %v563 = vunpack.c.l.b16 %v509
      %v564 = vunpack.c.l.b16 %v510
      %v565 = vpack.c.b16 %v542, %v541
      %v566 = vpack.c.b16 %v544, %v543
      %v567 = vpack.c.b16 %v546, %v545
      %v568 = vpack.c.b16 %v548, %v547
      %v569 = vpack.c.b16 %v550, %v549
      %v570 = vpack.c.b16 %v552, %v551
      %v571 = vpack.c.b16 %v554, %v553
      %v572 = vpack.c.b16 %v556, %v555
      %v573 = vpack.c.b16 %v558, %v557
      %v574 = vpack.c.b16 %v560, %v559
      %v575 = vpack.c.b16 %v562, %v561
      %v576 = vpack.c.b16 %v564, %v563
      %v590 = vsel %vm318, %v515, 0
      %592 = vmatprep.subr.bf16.mxu0 0
      %593 = vmatpush1.bf16.msra.mxu0 %v572
      %594 = vmatprep.subr.bf16.mxu0 0
      %595 = vmatpush1.bf16.msra.mxu0 %v571
      %596 = vmatprep.subr.bf16.mxu0 0
      %597 = vmatpush1.bf16.msra.mxu0 %v570
      %598 = vmatprep.subr.bf16.mxu0 0
      %599 = vmatpush1.bf16.msra.mxu0 %v569
      %600 = vmatprep.subr.bf16.mxu0 0
      %601 = vmatpush1.bf16.msra.mxu0 %v568
      %602 = vmatprep.subr.bf16.mxu0 0
      %603 = vmatpush1.bf16.msra.mxu0 %v567
      %604 = vmatprep.subr.bf16.mxu0 0
      %605 = vmatpush1.bf16.msra.mxu0 %v566
      %606 = vmatprep.subr.bf16.mxu0 0
      %607 = vmatpush1.bf16.msra.mxu0 %v565
      %608 = vmatprep.subr.bf16.mxu0 0
      %609 = vmatpush2.bf16.msra.mxu0 0
      %610 = vmatprep.subr.bf16.mxu0 0
      %611 = vmatpush2.bf16.msra.mxu0 0
      %612 = vmatprep.subr.bf16.mxu0 0
      %613 = vmatpush2.bf16.msra.mxu0 0
      %614 = vmatprep.subr.bf16.mxu0 0
      %615 = vmatpush2.bf16.msra.mxu0 0
      %616 = vmatprep.subr.bf16.mxu0 0
      %617 = vmatpush2.bf16.msra.mxu0 %v576
      %618 = vmatprep.subr.bf16.mxu0 0
      %619 = vmatpush2.bf16.msra.mxu0 %v575
      %620 = vmatprep.subr.bf16.mxu0 0
      %621 = vmatpush2.bf16.msra.mxu0 %v574
      %622 = vmatprep.subr.bf16.mxu0 0
      %623 = vmatpush2.bf16.msra.mxu0 %v573
      %624 = vmatprep.mubr.bf16.mxu0 %v590
      %625 = vmatmul.mubr.bf16.gmra.mxu0 %v514
      %v626 = vpop.f32.mrf.mxu0
      %v627 = vadd.f32 0.0, %v626
      %v628 = vpop.f32.mrf.mxu0
      %v629 = vpop.f32.mrf.mxu0
      %v630 = vadd.f32 0.0, %v629
      %v631 = vpop.f32.mrf.mxu0
      %632 = vdwg.mxu0
      %v633 = vadd.f32 %v479, %v627
      %v634 = vadd.f32 %v482, %v630
      %v635 = vld [vmem:[%s165 + $0x8] sm:$0xcc]
      %v636 = vld [vmem:[%s165 + $0x10] sm:$0xff]
      %v637 = vld [vmem:[%s165 + $0x18] sm:$0x33]
      %s638 = scalar_lea.vmem %s1, 288
      %v639 = vld [vmem:[%s638] sm:$0xf]
      %v640 = vld [vmem:[%s638 + $0x4] sm:$0xf]
      %v641 = vld [vmem:[%s638 + $0x8] sm:$0xf]
      %v642 = vld [vmem:[%s638 + $0xc] sm:$0xf]
      %v643 = vld [vmem:[%s638 + $0x10] sm:$0xf]
      %v644 = vld [vmem:[%s638 + $0x14] sm:$0xf]
      %v645 = vld [vmem:[%s638 + $0x18] sm:$0xf]
      %v646 = vld [vmem:[%s638 + $0x1c] sm:$0xf]
      %v647 = vld [vmem:[%s638 + $0x20] sm:$0xf]
      %v648 = vld [vmem:[%s638 + $0x24] sm:$0xf]
      %v649 = vld [vmem:[%s638 + $0x28] sm:$0xf]
      %v650 = vld [vmem:[%s638 + $0x2c] sm:$0xf]
      %v651 = vld [vmem:[%s638 + $0x30] sm:$0xf]
      %v652 = vld [vmem:[%s638 + $0x34] sm:$0xf]
      %v653 = vld [vmem:[%s638 + $0x38] sm:$0xf]
      %v654 = vld [vmem:[%s638 + $0x3c] sm:$0xf]
      %v655 = vld [vmem:[%s638 + $0x40] sm:$0xf]
      %v656 = vld [vmem:[%s638 + $0x44] sm:$0xf]
      %v657 = vld [vmem:[%s638 + $0x48] sm:$0xf]
      %v658 = vld [vmem:[%s638 + $0x4c] sm:$0xf]
      %v659 = vld [vmem:[%s638 + $0x50] sm:$0xf]
      %v660 = vld [vmem:[%s638 + $0x54] sm:$0xf]
      %v661 = vld [vmem:[%s638 + $0x58] sm:$0xf]
      %v662 = vld [vmem:[%s638 + $0x5c] sm:$0xf]
      %v666 = vunpack.c.l.b16 %v635
      %v667 = vunpack.c.h.b16 %v635
      %v668 = vunpack.c.l.b16 %v636
      %v669 = vunpack.c.h.b16 %v636
      %v670 = vunpack.c.l.b16 %v637
      %v671 = vunpack.c.h.b16 %v637
      %v672 = vpack.c.b16 %v668, %v666
      %v673 = vpack.c.b16 %v669, %v667
      %v674 = vpack.c.b16 %v670, %v670
      %v675 = vpack.c.b16 %v671, %v671
      %v676 = vrot.slane %v672, 2
      %v677 = vrot.slane %v674, 2
      %v678 = vsel %vm238, %v676, %v677
      %v679 = vrot.slane %v673, 2
      %v680 = vrot.slane %v675, 2
      %v681 = vsel %vm238, %v679, %v680
      %v707 = vunpack.c.l.b16 %v639
      %v708 = vunpack.c.l.b16 %v640
      %v709 = vunpack.c.l.b16 %v641
      %v710 = vunpack.c.l.b16 %v642
      %v711 = vunpack.c.l.b16 %v643
      %v712 = vunpack.c.l.b16 %v644
      %v713 = vunpack.c.l.b16 %v645
      %v714 = vunpack.c.l.b16 %v646
      %v715 = vunpack.c.l.b16 %v647
      %v716 = vunpack.c.l.b16 %v648
      %v717 = vunpack.c.l.b16 %v649
      %v718 = vunpack.c.l.b16 %v650
      %v719 = vunpack.c.l.b16 %v651
      %v720 = vunpack.c.l.b16 %v652
      %v721 = vunpack.c.l.b16 %v653
      %v722 = vunpack.c.l.b16 %v654
      %v723 = vunpack.c.l.b16 %v655
      %v724 = vunpack.c.l.b16 %v656
      %v725 = vunpack.c.l.b16 %v657
      %v726 = vunpack.c.l.b16 %v658
      %v727 = vunpack.c.l.b16 %v659
      %v728 = vunpack.c.l.b16 %v660
      %v729 = vunpack.c.l.b16 %v661
      %v730 = vunpack.c.l.b16 %v662
      %v731 = vpack.c.b16 %v708, %v707
      %v732 = vpack.c.b16 %v710, %v709
      %v733 = vpack.c.b16 %v712, %v711
      %v734 = vpack.c.b16 %v714, %v713
      %v735 = vpack.c.b16 %v716, %v715
      %v736 = vpack.c.b16 %v718, %v717
      %v737 = vpack.c.b16 %v720, %v719
      %v738 = vpack.c.b16 %v722, %v721
      %v739 = vpack.c.b16 %v724, %v723
      %v740 = vpack.c.b16 %v726, %v725
      %v741 = vpack.c.b16 %v728, %v727
      %v742 = vpack.c.b16 %v730, %v729
      %v756 = vsel %vm318, %v681, 0
      %758 = vmatprep.subr.bf16.mxu0 0
      %759 = vmatpush1.bf16.msra.mxu0 %v738
      %760 = vmatprep.subr.bf16.mxu0 0
      %761 = vmatpush1.bf16.msra.mxu0 %v737
      %762 = vmatprep.subr.bf16.mxu0 0
      %763 = vmatpush1.bf16.msra.mxu0 %v736
      %764 = vmatprep.subr.bf16.mxu0 0
      %765 = vmatpush1.bf16.msra.mxu0 %v735
      %766 = vmatprep.subr.bf16.mxu0 0
      %767 = vmatpush1.bf16.msra.mxu0 %v734
      %768 = vmatprep.subr.bf16.mxu0 0
      %769 = vmatpush1.bf16.msra.mxu0 %v733
      %770 = vmatprep.subr.bf16.mxu0 0
      %771 = vmatpush1.bf16.msra.mxu0 %v732
      %772 = vmatprep.subr.bf16.mxu0 0
      %773 = vmatpush1.bf16.msra.mxu0 %v731
      %774 = vmatprep.subr.bf16.mxu0 0
      %775 = vmatpush2.bf16.msra.mxu0 0
      %776 = vmatprep.subr.bf16.mxu0 0
      %777 = vmatpush2.bf16.msra.mxu0 0
      %778 = vmatprep.subr.bf16.mxu0 0
      %779 = vmatpush2.bf16.msra.mxu0 0
      %780 = vmatprep.subr.bf16.mxu0 0
      %781 = vmatpush2.bf16.msra.mxu0 0
      %782 = vmatprep.subr.bf16.mxu0 0
      %783 = vmatpush2.bf16.msra.mxu0 %v742
      %784 = vmatprep.subr.bf16.mxu0 0
      %785 = vmatpush2.bf16.msra.mxu0 %v741
      %786 = vmatprep.subr.bf16.mxu0 0
      %787 = vmatpush2.bf16.msra.mxu0 %v740
      %788 = vmatprep.subr.bf16.mxu0 0
      %789 = vmatpush2.bf16.msra.mxu0 %v739
      %790 = vmatprep.mubr.bf16.mxu0 %v756
      %791 = vmatmul.mubr.bf16.gmra.mxu0 %v678
      %v792 = vpop.f32.mrf.mxu0
      %v793 = vadd.f32 0.0, %v792
      %v794 = vpop.f32.mrf.mxu0
      %v795 = vpop.f32.mrf.mxu0
      %v796 = vadd.f32 0.0, %v795
      %v797 = vpop.f32.mrf.mxu0
      %798 = vdwg.mxu0
      %v799 = vadd.f32 %v633, %v793
      %v800 = vadd.f32 %v634, %v796
      %v801 = vld [vmem:[%s2] sm:$0x1]
      %v803 = vlaneseq
      %v804 = vshrl.u32 %v803, 7
      %v805 = vsub.s32 0, %v804
      %v806 = vrot.slane %v801, %v805
      %v808 = vadd.f32 %v799, %v806
      %v809 = vadd.f32 %v800, %v806
      %810 = vst [vmem:[%s170] sm:$0xff] %v808
      %811 = vst [vmem:[%s170 + $0x8] sm:$0xff] %v809
      %p812 = scmp.lt.s32.totalorder %s14, 11
      %s813 = scalar_select %p812, %s14, 11
      %s814 = smul.addr %s813, 2
      %s815 = smul.addr %s814, 8
      %s816 = scalar_lea.vmem %s3, %s815
      // Predicated region
      $region33: #{_patch_embed_forward.1} parent=31 // pred_check
        %p817 = pneg %p100
      $region34: #{_patch_embed_forward.1} parent=31 // pred_check_branch
        %819 = sbr.rel (%p817) target = $region36
      $region35: #{_patch_embed_forward.1} parent=31 // pred_region
        _
      $region36: #{_patch_embed_forward.1} parent=31 // pred_fallthru
        _
    $region32: #{_patch_embed_forward.1} parent=5 // pred_fallthru
      _
    %p820 = scmp.le.s32.totalorder 2, %s9
    // Predicated region
    $region37: #{_patch_embed_forward.1} parent=5 // pred_check
      %p821 = pneg %p820
    $region38: #{_patch_embed_forward.1} parent=5 // pred_check_branch
      %823 = sbr.rel (%p821) target = $region40
    $region39: #{_patch_embed_forward.1} parent=5 // pred_region
      %s824 = ssub.s32 %s9, 2
      // Predicated region
      $region41: #{_patch_embed_forward.1} parent=39 // pred_check
        %p825 = pneg %p106
      $region42: #{_patch_embed_forward.1} parent=39 // pred_check_branch
        %827 = sbr.rel (%p825) target = $region44
      $region43: #{_patch_embed_forward.1} parent=39 // pred_region
        %p828 = scmp.lt.s32.totalorder %s15, 11
        %s829 = scalar_select %p828, %s15, 11
        %s830 = smul.addr %s829, 2
        %s831 = smul.addr %s830, 8
        %s832 = scalar_lea.vmem %s3, %s831
      $region44: #{_patch_embed_forward.1} parent=39 // pred_fallthru
        _
    $region40: #{_patch_embed_forward.1} parent=5 // pred_fallthru
      _
  $region6: #{_patch_embed_forward.1} parent=0 // loop_footer
    %s13 = sadd.s32 1, %s9
  $region7: #{_patch_embed_forward.1} parent=0 // loop_footer_branch
    %8 = sbr.rel target = $region3
  $region8: #{_patch_embed_forward.1} parent=0 // loop_exit
    _

</llo_original>
